<compile_context>
chip_gen: v5e
topology: v5e:2x2
jax: 0.10.0
libtpu: 0.0.40
codegen_flags: <defaults>
</compile_context>

<pallas_src>
import functools

import numpy as np
import jax
import jax.numpy as jnp
from jax import lax
from jax.experimental import pallas as pl
from jax.experimental.pallas import tpu as pltpu


def _round_up(x, m):
    return ((x + m - 1) // m) * m


# ----------------------------------------------------------------------------
# Pallas kernel: all patches / all batches in one invocation.
#   patches_ref : (P, M)    amplitude index in sublanes, fused batch*patch in lanes
#   uk_ref      : (K, P)    first K rows of the composed circuit unitary
#   fold_ref    : (M, OUT)  block-diagonal overlap-average matrix (1/count baked in)
#   map_ref     : (1, OUT)  OUT = bs * HW_pad (lane-dense output slab)
# ----------------------------------------------------------------------------
def encoder_kernel(patches_ref, uk_ref, fold_ref, map_ref):
    a = patches_ref[...]                                      # (P, M) f32
    # all-zero patch -> AmplitudeEmbedding skipped -> state stays |0...0>
    absmax = jnp.max(jnp.abs(a), axis=0, keepdims=True)       # (1, M)
    is_zero = absmax == 0.0
    sq = jnp.sum(a * a, axis=0, keepdims=True)                # (1, M)
    norm = jnp.sqrt(jnp.where(sq == 0.0, 1.0, sq))
    row0 = lax.broadcasted_iota(jnp.int32, a.shape, 0) == 0
    zero_state = jnp.where(row0, 1.0, 0.0)                    # (P, M)
    state = jnp.where(is_zero, zero_state, a / norm)          # (P, M)
    # kept amplitudes after the MPS circuit:  psi = U[:K, :] @ state
    psi = jnp.dot(uk_ref[...], state, preferred_element_type=jnp.float32)   # (K, M)
    # SWAP-test expval == prob(top `discarded_wires` qubits are |0>)
    probs = jnp.sum(psi * psi, axis=0, keepdims=True)         # (1, M)
    # overlap-average fold (1/count already folded into fold_ref on the host)
    map_ref[...] = jnp.dot(probs, fold_ref[...], preferred_element_type=jnp.float32)


def run_encoder_kernel(patches_t, uk, fold):
    P, M = patches_t.shape
    K, _ = uk.shape
    OUT = fold.shape[1]
    return pl.pallas_call(
        encoder_kernel,
        out_shape=jax.ShapeDtypeStruct((1, OUT), jnp.float32),
        grid=(1,),
        in_specs=[
            pl.BlockSpec((P, M), lambda i: (0, 0)),
            pl.BlockSpec((K, P), lambda i: (0, 0)),
            pl.BlockSpec((M, OUT), lambda i: (0, 0)),
        ],
        out_specs=pl.BlockSpec((1, OUT), lambda i: (0, 0)),
        compiler_params=pltpu.CompilerParams(dimension_semantics=("arbitrary",)),
    )(patches_t, uk, fold)


# ----------------------------------------------------------------------------
# Host glue: circuit-unitary composition, cover matrix, patch gather.
# ----------------------------------------------------------------------------
def ry_mat(theta):
    c, s = np.cos(theta / 2.0), np.sin(theta / 2.0)
    return np.array([[c, -s], [s, c]], dtype=np.float64)


CNOT4 = np.array([[1, 0, 0, 0],
                  [0, 1, 0, 0],
                  [0, 0, 0, 1],
                  [0, 0, 1, 0]], dtype=np.float64)


def build_circuit_unitary(weights_mps, wires):
    """Compose the qml.MPS ladder (RY,RY,CNOT blocks, MSB-first wire ordering)."""
    U = np.eye(2 ** wires, dtype=np.float64)
    mps_layers, n_blocks, _ = weights_mps.shape
    for layer in range(mps_layers):
        for blk in range(n_blocks):     # block acts on register qubits (blk, blk+1)
            t0, t1 = weights_mps[layer, blk]
            B = CNOT4 @ np.kron(ry_mat(t0), ry_mat(t1))
            full = np.kron(np.eye(2 ** blk),
                           np.kron(B, np.eye(2 ** (wires - blk - 2))))
            U = full @ U
    return U


def build_cover(image_size, padding, kernel_size, stride):
    Hp = image_size + 2 * padding
    ppr = (Hp - kernel_size) // stride + 1
    patch_no = ppr * ppr
    cover = np.zeros((patch_no, Hp * Hp), dtype=np.float32)
    for p in range(patch_no):
        r0 = (p // ppr) * stride
        c0 = (p % ppr) * stride
        for k in range(kernel_size):
            for l in range(kernel_size):
                cover[p, (r0 + k) * Hp + (c0 + l)] = 1.0
    return cover


def make_encoder(weights_mps, *, image_size, kernel_size, stride, padding,
                 wires, discarded_wires):
    P = 2 ** wires
    K = 2 ** (wires - discarded_wires)
    Hp = image_size + 2 * padding
    ppr = (Hp - kernel_size) // stride + 1
    patch_no = ppr * ppr
    HW = Hp * Hp
    N_pad = _round_up(patch_no, 8)
    HW_pad = _round_up(HW, 128)
    ks2 = kernel_size * kernel_size

    # Circuit unitary composed once on the host, sliced to the kept rows.
    U = build_circuit_unitary(np.asarray(weights_mps, np.float64), wires)
    uk = jnp.asarray(U[:K, :], jnp.float32)                     # (K, P)

    # Overlap-average matrix: cover / count with a zero-coverage guard.
    # NOTE: the PyTorch reference produces NaN for never-covered pixels (0/0);
    # here such pixels are guarded to 0 (identical for all fully-covered configs).
    cover = build_cover(image_size, padding, kernel_size, stride)   # (patch_no, HW)
    count = cover.sum(axis=0, keepdims=True)
    cover_norm = np.where(count > 0.0, cover / np.maximum(count, 1.0), 0.0)
    cover_pad = np.zeros((N_pad, HW_pad), np.float32)
    cover_pad[:patch_no, :HW] = cover_norm

    # Patch gather indices (single vectorised gather; no python loops at runtime).
    row_idx_np = (np.arange(ppr) * stride)[:, None] + np.arange(kernel_size)[None, :]
    row_idx = jnp.asarray(row_idx_np, jnp.int32)                # (ppr, ks)

    @functools.lru_cache(maxsize=None)
    def _fold_for_bs(bs):
        M_pad = _round_up(bs * N_pad, 128)
        F = np.zeros((M_pad, bs * HW_pad), np.float32)
        for b in range(bs):
            F[b * N_pad:(b + 1) * N_pad, b * HW_pad:(b + 1) * HW_pad] = cover_pad
        return jnp.asarray(F)

    @jax.jit
    def forward(img):
        bs = img.shape[0]
        M_pad = _round_up(bs * N_pad, 128)
        fold = _fold_for_bs(bs)                                 # trace-time constant

        imgp = img[:, 0].astype(jnp.float32)                    # channel 0 only
        if padding > 0:
            imgp = jnp.pad(imgp, ((0, 0), (padding, padding), (padding, padding)))
        # pat[b, r, c, i, l] = imgp[b, r*stride + i, c*stride + l]
        pat = imgp[:, row_idx[:, None, :, None], row_idx[None, :, None, :]]
        pat = pat.reshape(bs, patch_no, ks2)
        pat = jnp.pad(pat, ((0, 0), (0, N_pad - patch_no), (0, P - ks2)))
        pat = pat.reshape(bs * N_pad, P)
        pat = jnp.pad(pat, ((0, M_pad - bs * N_pad), (0, 0)))
        pat_t = pat.T                                           # (P, M_pad)

        out = run_encoder_kernel(pat_t, uk, fold)               # (1, bs*HW_pad)
        m = out.reshape(bs, HW_pad)[:, :HW].reshape(bs, Hp, Hp)
        if padding > 0:
            m = m[:, padding:-padding, padding:-padding]
        return m

    return forward


# ----------------------------------------------------------------------------
# Pure-numpy reference mirroring the PyTorch forward loops (for verification).
# ----------------------------------------------------------------------------
def ref_circuit(patch, weights_mps, wires, discarded_wires):
    P = 2 ** wires
    a = np.zeros(P, dtype=np.float64)
    a[:len(patch)] = patch
    n = np.linalg.norm(a)
    if n == 0:
        a[:] = 0.0
        a[0] = 1.0
    else:
        a = a / n
    psi = a.reshape((2,) * wires)
    for layer in range(weights_mps.shape[0]):
        for blk in range(weights_mps.shape[1]):
            t0, t1 = weights_mps[layer, blk]
            B = (CNOT4 @ np.kron(ry_mat(t0), ry_mat(t1))).reshape(2, 2, 2, 2)
            psi = np.tensordot(B, psi, axes=[[2, 3], [blk, blk + 1]])
            psi = np.moveaxis(psi, [0, 1], [blk, blk + 1])
    flat = psi.reshape(-1)
    return float(np.sum(flat[:2 ** (wires - discarded_wires)] ** 2))


def reference_forward(img, weights_mps, *, image_size, kernel_size, stride, padding,
                      wires, discarded_wires):
    img = np.asarray(img, np.float64)
    bs, ch, h, w = img.shape
    if padding > 0:
        img = np.pad(img, ((0, 0), (0, 0), (padding, padding), (padding, padding)))
        h += 2 * padding
        w += 2 * padding
    patch_no = ((h - kernel_size) // stride + 1) ** 2
    out = np.zeros((bs, 1, patch_no))
    for b in range(bs):
        idx = 0
        for j in range(0, h - kernel_size + 1, stride):
            for k in range(0, w - kernel_size + 1, stride):
                a = np.array([img[b, 0, j + i, k + l]
                              for i in range(kernel_size) for l in range(kernel_size)])
                out[b, 0, idx] = ref_circuit(a, weights_mps, wires, discarded_wires)
                idx += 1
    Hp = image_size + 2 * padding
    mp = np.zeros((bs, Hp, Hp))
    cnt = np.zeros((bs, Hp, Hp))
    ppr = (Hp - kernel_size) // stride + 1
    for b in range(bs):
        for p in range(patch_no):
            r0 = (p // ppr) * stride
            c0 = (p % ppr) * stride
            for k in range(kernel_size):
                for l in range(kernel_size):
                    mp[b, r0 + k, c0 + l] += out[b, 0, p]
                    cnt[b, r0 + k, c0 + l] += 1
    mp = mp / cnt
    if padding > 0:
        mp = mp[:, padding:-padding, padding:-padding]
    return mp


# ----------------------------------------------------------------------------
if __name__ == "__main__":
    # Encoder config (small, consistent with the module's constructor):
    image_size = 6
    kernel_size = 4          # patch length 16 == 2**wires
    stride = 2
    padding = 1
    wires = 4
    discarded_wires = 2
    mps_layers = 2
    n_params_block = 2
    n_blocks = wires - 1     # qml.MPS.get_n_blocks for n_block_wires == 2
    bs, ch = 2, 1

    key = jax.random.PRNGKey(0)
    kx, kw = jax.random.split(key)
    x = jax.random.normal(kx, (bs, ch, image_size, image_size), dtype=jnp.float32)
    weights_mps = jax.random.normal(kw, (mps_layers, n_blocks, n_params_block),
                                    dtype=jnp.float32)   # ~ torch.nn.init.normal_

    encoder = make_encoder(
        weights_mps,
        image_size=image_size, kernel_size=kernel_size, stride=stride,
        padding=padding, wires=wires, discarded_wires=discarded_wires)

    result = jax.block_until_ready(encoder(x))

    ref = reference_forward(
        np.asarray(x), np.asarray(weights_mps, np.float64),
        image_size=image_size, kernel_size=kernel_size, stride=stride,
        padding=padding, wires=wires, discarded_wires=discarded_wires)

    assert result.shape == (bs, image_size, image_size)
    np.testing.assert_allclose(np.asarray(result), ref, rtol=1e-4, atol=1e-5)
    print("KERNEL_OK")
</pallas_src>

<mosaic_0001>
module attributes {stable_mosaic.version = 11 : i64} {
  func.func @encoder_kernel(%arg0: i32, %arg1: memref<16x128xf32, #tpu.memory_space<vmem>>, %arg2: memref<4x16xf32, #tpu.memory_space<vmem>>, %arg3: memref<128x256xf32, #tpu.memory_space<vmem>>, %arg4: memref<1x256xf32, #tpu.memory_space<vmem>>) attributes {dimension_semantics = [#tpu.dimension_semantics<arbitrary>], iteration_bounds = array<i64: 1>, scalar_prefetch = 0 : i64, scratch_operands = 0 : i64, tpu.core_type = #tpu.core_type<tc>, window_params = [{pipeline_mode = #tpu.pipeline_mode<synchronous>, transform_indices = @transform_0, window_bounds = array<i64: 16, 128>}, {pipeline_mode = #tpu.pipeline_mode<synchronous>, transform_indices = @transform_1, window_bounds = array<i64: 4, 16>}, {pipeline_mode = #tpu.pipeline_mode<synchronous>, transform_indices = @transform_2, window_bounds = array<i64: 128, 256>}, {pipeline_mode = #tpu.pipeline_mode<synchronous>, transform_indices = @transform_3, window_bounds = array<i64: 1, 256>}]} {
    %c0 = arith.constant 0 : index
    %c0_0 = arith.constant 0 : index
    %0 = vector.load %arg1[%c0, %c0_0] : memref<16x128xf32, #tpu.memory_space<vmem>>, vector<16x128xf32>
    %1 = math.absf %0 : vector<16x128xf32>
    %cst = arith.constant dense<0xFF800000> : vector<128xf32>
    %2 = vector.multi_reduction <maximumf>, %1, %cst [0] : vector<16x128xf32> to vector<128xf32>
    %3 = vector.shape_cast %2 : vector<128xf32> to vector<1x128xf32>
    %cst_1 = arith.constant 0.000000e+00 : f32
    %4 = vector.broadcast %cst_1 : f32 to vector<1x128xf32>
    %5 = arith.cmpf oeq, %3, %4 : vector<1x128xf32>
    %6 = arith.mulf %0, %0 : vector<16x128xf32>
    %cst_2 = arith.constant dense<0.000000e+00> : vector<128xf32>
    %7 = vector.multi_reduction <add>, %6, %cst_2 [0] : vector<16x128xf32> to vector<128xf32>
    %8 = vector.shape_cast %7 : vector<128xf32> to vector<1x128xf32>
    %cst_3 = arith.constant 0.000000e+00 : f32
    %9 = vector.broadcast %cst_3 : f32 to vector<1x128xf32>
    %10 = arith.cmpf oeq, %8, %9 : vector<1x128xf32>
    %cst_4 = arith.constant 1.000000e+00 : f32
    %11 = vector.broadcast %cst_4 : f32 to vector<1x128xf32>
    %12 = arith.select %10, %11, %8 : vector<1x128xi1>, vector<1x128xf32>
    %13 = math.sqrt %12 : vector<1x128xf32>
    %14 = tpu.iota {dimensions = array<i32: 0>} : vector<16x128xi32>
    %c0_i32 = arith.constant 0 : i32
    %15 = vector.broadcast %c0_i32 : i32 to vector<16x128xi32>
    %16 = arith.cmpi eq, %14, %15 : vector<16x128xi32>
    %cst_5 = arith.constant 1.000000e+00 : f32
    %cst_6 = arith.constant 0.000000e+00 : f32
    %17 = vector.broadcast %cst_5 : f32 to vector<16x128xf32>
    %18 = vector.broadcast %cst_6 : f32 to vector<16x128xf32>
    %19 = arith.select %16, %17, %18 : vector<16x128xi1>, vector<16x128xf32>
    %20 = vector.broadcast %13 : vector<1x128xf32> to vector<16x128xf32>
    %21 = arith.divf %0, %20 : vector<16x128xf32>
    %22 = vector.shape_cast %5 : vector<1x128xi1> to vector<1x128xi1>
    %23 = vector.broadcast %22 : vector<1x128xi1> to vector<16x128xi1>
    %24 = arith.select %23, %19, %21 : vector<16x128xi1>, vector<16x128xf32>
    %c0_7 = arith.constant 0 : index
    %c0_8 = arith.constant 0 : index
    %25 = vector.load %arg2[%c0_7, %c0_8] : memref<4x16xf32, #tpu.memory_space<vmem>>, vector<4x16xf32>
    %cst_9 = arith.constant dense<0.000000e+00> : vector<4x128xf32>
    %26 = tpu.matmul %25, %24, %cst_9 {dimension_numbers = #tpu.dot_dimension_numbers<[1], [0], [0], [1], [0, 0, 1, 1], [], []>} : vector<4x16xf32>, vector<16x128xf32>, vector<4x128xf32> -> vector<4x128xf32>
    %27 = arith.mulf %26, %26 : vector<4x128xf32>
    %cst_10 = arith.constant dense<0.000000e+00> : vector<128xf32>
    %28 = vector.multi_reduction <add>, %27, %cst_10 [0] : vector<4x128xf32> to vector<128xf32>
    %29 = vector.shape_cast %28 : vector<128xf32> to vector<1x128xf32>
    %c0_11 = arith.constant 0 : index
    %c0_12 = arith.constant 0 : index
    %30 = vector.load %arg3[%c0_11, %c0_12] : memref<128x256xf32, #tpu.memory_space<vmem>>, vector<128x256xf32>
    %cst_13 = arith.constant dense<0.000000e+00> : vector<1x256xf32>
    %31 = tpu.matmul %29, %30, %cst_13 {dimension_numbers = #tpu.dot_dimension_numbers<[1], [0], [0], [1], [0, 0, 1, 1], [], []>} : vector<1x128xf32>, vector<128x256xf32>, vector<1x256xf32> -> vector<1x256xf32>
    %c0_14 = arith.constant 0 : index
    %c0_15 = arith.constant 0 : index
    %32 = vector.load %arg4[%c0_14, %c0_15] : memref<1x256xf32, #tpu.memory_space<vmem>>, vector<1x256xf32>
    tpu.vector_store %arg4[%c0_14, %c0_15], %31 {strides = array<i32>} : memref<1x256xf32, #tpu.memory_space<vmem>>, vector<1x256xf32>,
    return
  }
  func.func @transform_0(%arg0: i32) -> (i32, i32) {
    %c0_i32 = arith.constant 0 : i32
    %c0_i32_0 = arith.constant 0 : i32
    %c0_i32_1 = arith.constant 0 : i32
    return %c0_i32, %c0_i32_0 : i32, i32
  }
  func.func @transform_1(%arg0: i32) -> (i32, i32) {
    %c0_i32 = arith.constant 0 : i32
    %c0_i32_0 = arith.constant 0 : i32
    %c0_i32_1 = arith.constant 0 : i32
    return %c0_i32, %c0_i32_0 : i32, i32
  }
  func.func @transform_2(%arg0: i32) -> (i32, i32) {
    %c0_i32 = arith.constant 0 : i32
    %c0_i32_0 = arith.constant 0 : i32
    %c0_i32_1 = arith.constant 0 : i32
    return %c0_i32, %c0_i32_0 : i32, i32
  }
  func.func @transform_3(%arg0: i32) -> (i32, i32) {
    %c0_i32 = arith.constant 0 : i32
    %c0_i32_0 = arith.constant 0 : i32
    %c0_i32_1 = arith.constant 0 : i32
    return %c0_i32, %c0_i32_0 : i32, i32
  }
}

</mosaic_0001>

<llo_original>
// kernel: forward.1
$region0: #{forward.1}
  #allocation0 [shape = 'u32[]', space=smem, size = 0x4, offset = 0x4, fixed_abs, tag = 'smem constant byte address 0x4 - core index']
  #allocation1 [shape = 'u32[72,128]{1,0:T(1,128)}', space=vmem, size = 0x9000, scoped, tag = 'internal scratch']
  %s0 = inlined_call_operand.vmem [shape: f32[16,128], index: 0, kind: input, shape index: {}]
  %s1 = inlined_call_operand.vmem [shape: f32[4,16], index: 1, kind: input, shape index: {}]
  %s2 = inlined_call_operand.vmem [shape: f32[128,256], index: 2, kind: input, shape index: {}]
  %s3 = inlined_call_operand.vmem [shape: f32[1,256], index: 3, kind: output, shape index: {}]
  %s4 = sld [smem:[#allocation0]]
  $region22: #{forward.1} parent=0
    _
  %s6 = ssub.s32 1, %s4
  %s7 = scalar_select 0, %s6, %s4
  // Predicated region
  $region2: #{forward.1} parent=0 // pred_check
    _
  $region3: #{forward.1} parent=0 // pred_check_branch
    %9 = sbr.rel (0) target = $region5
  $region4: #{forward.1} parent=0 // pred_region
    _
  $region5: #{forward.1} parent=0 // pred_fallthru
    _
  // Predicated region
  $region6: #{forward.1} parent=0 // pred_check
    _
  $region7: #{forward.1} parent=0 // pred_check_branch
    %11 = sbr.rel (0) target = $region9
  $region8: #{forward.1} parent=0 // pred_region
    _
  $region9: #{forward.1} parent=0 // pred_fallthru
    _
  // Predicated region
  $region10: #{forward.1} parent=0 // pred_check
    _
  $region11: #{forward.1} parent=0 // pred_check_branch
    %13 = sbr.rel (0) target = $region13
  $region12: #{forward.1} parent=0 // pred_region
    _
  $region13: #{forward.1} parent=0 // pred_fallthru
    _
  %v14 = vld [vmem:[%s0] sm:$0xff]
  %v15 = vld [vmem:[%s0 + $0x8] sm:$0xff]
  %v16 = vand.u32 2147483647, %v14
  %v17 = vand.u32 2147483647, %v15
  %v18 = vmax.f32 %v16, %v17
  %v19 = vrot.slane %v18, 4
  %v20 = vmax.f32 %v18, %v19
  %v21 = vrot.slane %v20, 2
  %v22 = vmax.f32 %v20, %v21
  %v23 = vrot.slane %v22, 1
  %v24 = vmax.f32 %v22, %v23
  %vm25 = vcmp.eq.f32.partialorder %v24, 0.0
  %v26 = vmul.f32 %v14, %v14
  %v27 = vmul.f32 %v15, %v15
  %v28 = vadd.f32 %v26, %v27
  %v29 = vrot.slane %v28, 4
  %v30 = vadd.f32 %v28, %v29
  %v31 = vrot.slane %v30, 2
  %v32 = vadd.f32 %v30, %v31
  %v33 = vrot.slane %v32, 1
  %v34 = vadd.f32 %v32, %v33
  %vm35 = vcmp.eq.f32.partialorder %v34, 0.0
  %v36 = vsel %vm35, 1.0, %v34
  %v37 = vrsqrt.pop %v36
  %v38 = vmul.f32 %v37, %v36
  %v39 = vmul.f32 %v38, %v37
  %v40 = vmul.f32 0.5, %v39
  %v41 = vsub.f32 1.5, %v40
  %v42 = vmul.f32 %v37, %v41
  %v43 = vmul.f32 %v36, %v42
  %vm44 = vcmp.eq.f32.partialorder %v36, inf
  %v45 = vsel %vm44, %v36, %v43
  %vm46 = vcmp.eq.f32.partialorder %v36, 0.0
  %v47 = vand.u32 %v36, 2147483648
  %v48 = vsel %vm46, %v47, %v45
  %v49 = vlaneseq
  %v50 = vshrl.u32 %v49, 7
  %v51 = vadd.s32 %v50, 8
  %vm52 = vcmp.eq.s32.totalorder %v50, 0
  %vm53 = vcmp.eq.s32.totalorder %v51, 0
  %v54 = vsel %vm52, 1.0, 0.0
  %v55 = vsel %vm53, 1.0, 0.0
  %v56 = vrcp.pop %v48
  %v57 = vmul.f32 %v48, %v56
  %v58 = vsub.f32 1.0, %v57
  %v59 = vmul.f32 %v56, %v58
  %v60 = vadd.f32 %v56, %v59
  %vm61 = vweird.f32 %v48
  %vm62 = vweird.f32 %v56
  %vm63 = vmor %vm61, %vm62
  %v64 = vsel %vm63, %v56, %v60
  %v65 = vand.u32 2147483647, %v48
  %vm66 = vcmp.eq.f32.partialorder %v65, 8.507059e+37
  %v67 = vand.u32 %v48, 2147483648
  %v68 = vor.u32 1.1754944e-38, %v67
  %v69 = vsel %vm66, %v68, %v64
  %v70 = vmul.f32 %v14, %v69
  %v71 = vmul.f32 %v15, %v69
  %v72 = vsel %vm25, 1, 0
  %vm73 = vcmp.eq.s32.totalorder %v72, 1
  %v74 = vsel %vm73, %v54, %v70
  %v75 = vsel %vm73, %v55, %v71
  %v76 = vld [vmem:[%s1] sm:$0xf]
  %vm77 = vcmask 130048
  %v79 = vsel %vm77, %v76, 0
  %81 = vmatpush.msra.mxu0 0.0
  %82 = vmatpush.msra.mxu0 0.0
  %83 = vmatpush.msra.mxu0 0.0
  %84 = vmatpush.msra.mxu0 0.0
  %85 = vmatpush.msra.mxu0 0.0
  %86 = vmatpush.msra.mxu0 0.0
  %87 = vmatpush.msra.mxu0 0.0
  %88 = vmatpush.msra.mxu0 0.0
  %89 = vmatpush.msra.mxu0 0.0
  %90 = vmatpush.msra.mxu0 0.0
  %91 = vmatpush.msra.mxu0 0.0
  %92 = vmatpush.msra.mxu0 0.0
  %93 = vmatpush.msra.mxu0 0.0
  %94 = vmatpush.msra.mxu0 0.0
  %95 = vmatpush.msra.mxu0 %v75
  %96 = vmatpush.msra.mxu0 %v74
  %97 = vmatmul.f32.gmra.mxu0 %v79
  %v98 = vpop.f32.mrf.mxu0
  %v99 = vadd.f32 0.0, %v98
  %100 = vdwg.mxu0
  %v101 = vmul.f32 %v99, %v99
  %vm102 = vcmask 1043456
  %v103 = vsel %vm102, %v101, 0.0
  %v104 = vrot.slane %v103, 4
  %v105 = vadd.f32 %v103, %v104
  %v106 = vrot.slane %v105, 2
  %v107 = vadd.f32 %v105, %v106
  %v108 = vrot.slane %v107, 1
  %v109 = vadd.f32 %v107, %v108
  %v110 = vld [vmem:[%s2] sm:$0xff]
  %v111 = vld [vmem:[%s2 + $0x8] sm:$0xff]
  %v112 = vld [vmem:[%s2 + $0x10] sm:$0xff]
  %v113 = vld [vmem:[%s2 + $0x18] sm:$0xff]
  %v114 = vld [vmem:[%s2 + $0x20] sm:$0xff]
  %v115 = vld [vmem:[%s2 + $0x28] sm:$0xff]
  %v116 = vld [vmem:[%s2 + $0x30] sm:$0xff]
  %v117 = vld [vmem:[%s2 + $0x38] sm:$0xff]
  %v118 = vld [vmem:[%s2 + $0x40] sm:$0xff]
  %v119 = vld [vmem:[%s2 + $0x48] sm:$0xff]
  %v120 = vld [vmem:[%s2 + $0x50] sm:$0xff]
  %v121 = vld [vmem:[%s2 + $0x58] sm:$0xff]
  %v122 = vld [vmem:[%s2 + $0x60] sm:$0xff]
  %v123 = vld [vmem:[%s2 + $0x68] sm:$0xff]
  %v124 = vld [vmem:[%s2 + $0x70] sm:$0xff]
  %v125 = vld [vmem:[%s2 + $0x78] sm:$0xff]
  %v126 = vld [vmem:[%s2 + $0x80] sm:$0xff]
  %v127 = vld [vmem:[%s2 + $0x88] sm:$0xff]
  %v128 = vld [vmem:[%s2 + $0x90] sm:$0xff]
  %v129 = vld [vmem:[%s2 + $0x98] sm:$0xff]
  %v130 = vld [vmem:[%s2 + $0xa0] sm:$0xff]
  %v131 = vld [vmem:[%s2 + $0xa8] sm:$0xff]
  %v132 = vld [vmem:[%s2 + $0xb0] sm:$0xff]
  %v133 = vld [vmem:[%s2 + $0xb8] sm:$0xff]
  %v134 = vld [vmem:[%s2 + $0xc0] sm:$0xff]
  %v135 = vld [vmem:[%s2 + $0xc8] sm:$0xff]
  %v136 = vld [vmem:[%s2 + $0xd0] sm:$0xff]
  %v137 = vld [vmem:[%s2 + $0xd8] sm:$0xff]
  %v138 = vld [vmem:[%s2 + $0xe0] sm:$0xff]
  %v139 = vld [vmem:[%s2 + $0xe8] sm:$0xff]
  %v140 = vld [vmem:[%s2 + $0xf0] sm:$0xff]
  %v141 = vld [vmem:[%s2 + $0xf8] sm:$0xff]
  %142 = vmatpush.msra.mxu0 %v140
  %143 = vmatpush.msra.mxu0 %v138
  %144 = vmatpush.msra.mxu0 %v136
  %145 = vmatpush.msra.mxu0 %v134
  %146 = vmatpush.msra.mxu0 %v132
  %147 = vmatpush.msra.mxu0 %v130
  %148 = vmatpush.msra.mxu0 %v128
  %149 = vmatpush.msra.mxu0 %v126
  %150 = vmatpush.msra.mxu0 %v124
  %151 = vmatpush.msra.mxu0 %v122
  %152 = vmatpush.msra.mxu0 %v120
  %153 = vmatpush.msra.mxu0 %v118
  %154 = vmatpush.msra.mxu0 %v116
  %155 = vmatpush.msra.mxu0 %v114
  %156 = vmatpush.msra.mxu0 %v112
  %157 = vmatpush.msra.mxu0 %v110
  %158 = vmatmul.f32.gmra.mxu0 %v109
  %v159 = vpop.f32.mrf.mxu0
  %v160 = vadd.f32 0.0, %v159
  %161 = vdwg.mxu0
  %162 = vmatpush.msra.mxu0 %v141
  %163 = vmatpush.msra.mxu0 %v139
  %164 = vmatpush.msra.mxu0 %v137
  %165 = vmatpush.msra.mxu0 %v135
  %166 = vmatpush.msra.mxu0 %v133
  %167 = vmatpush.msra.mxu0 %v131
  %168 = vmatpush.msra.mxu0 %v129
  %169 = vmatpush.msra.mxu0 %v127
  %170 = vmatpush.msra.mxu0 %v125
  %171 = vmatpush.msra.mxu0 %v123
  %172 = vmatpush.msra.mxu0 %v121
  %173 = vmatpush.msra.mxu0 %v119
  %174 = vmatpush.msra.mxu0 %v117
  %175 = vmatpush.msra.mxu0 %v115
  %176 = vmatpush.msra.mxu0 %v113
  %177 = vmatpush.msra.mxu0 %v111
  %178 = vmatmul.f32.gmra.mxu0 %v109
  %v179 = vpop.f32.mrf.mxu0
  %v180 = vadd.f32 0.0, %v179
  %181 = vdwg.mxu0
  %v184 = vrot.slane %v180, 7
  %vm185 = vcmask 1040384
  %v186 = vsel %vm185, %v160, %v184
  %v188 = vlaneseq
  %vm189 = vcmp.ge.s32.totalorder %v188, 0
  %vm190 = vcmp.lt.s32.totalorder %v188, 256
  %vm191 = vmand %vm189, %vm190
  %192 = vst.msk [vmem:[%s3] sm:$0x3] %vm191, %v186
  // Predicated region
  $region14: #{forward.1} parent=0 // pred_check
    _
  $region15: #{forward.1} parent=0 // pred_check_branch
    %194 = sbr.rel (0) target = $region17
  $region16: #{forward.1} parent=0 // pred_region
    _
  $region17: #{forward.1} parent=0 // pred_fallthru
    _
  // Predicated region
  $region18: #{forward.1} parent=0 // pred_check
    _
  $region19: #{forward.1} parent=0 // pred_check_branch
    %196 = sbr.rel (0) target = $region21
  $region20: #{forward.1} parent=0 // pred_region
    _
  $region21: #{forward.1} parent=0 // pred_fallthru
    _

</llo_original>
